<compile_context>
chip_gen: v5e
topology: v5e:2x2
jax: 0.10.0
libtpu: 0.0.40
codegen_flags: <defaults>
</compile_context>

<pallas_src>
import jax
import jax.numpy as jnp
from jax import lax
from jax.experimental import pallas as pl
from jax.experimental.pallas import tpu as pltpu  # noqa: F401  (TPU backend)


def linear_residual_kernel(x_ref, w_ref, b_ref, o_ref):
    x = x_ref[...]                        # (N, F_in)     natural layout
    w = w_ref[...]                        # (F_out, F_in) PyTorch layout
    b = b_ref[...]                        # (1, F_out)    broadcasts over rows
    # y = x @ W^T without materializing a transpose: contract x dim 1 with
    # w dim 1.
    y = lax.dot_general(
        x, w,
        dimension_numbers=(((1,), (1,)), ((), ())),
        preferred_element_type=jnp.float32,
    )                                     # (N, F_out)
    o_ref[...] = (y + b + x).astype(o_ref.dtype)


@jax.jit
def linear_residual(x, w, b):
    """x: (N, F_in), w: (F_out, F_in) PyTorch-style, b: (F_out,)."""
    N, F_in = x.shape
    F_out = w.shape[0]
    # Residual `v + x1` requires matching feature dims.
    assert F_in == F_out, "residual add requires in_features == out_features"

    b2d = b.reshape(1, F_out)             # metadata-only inside jit

    flops = 2 * N * F_in * F_out + 2 * N * F_out          # matmul + bias + res
    bytes_accessed = 4 * (N * F_in + F_out * F_in + F_out + N * F_out)

    return pl.pallas_call(
        linear_residual_kernel,
        out_shape=jax.ShapeDtypeStruct((N, F_out), x.dtype),
        # Tiny problem -> one block covering the full arrays (block == array
        # shape, so the (8,128) divisibility rule does not apply).
        in_specs=[
            pl.BlockSpec((N, F_in), lambda: (0, 0)),
            pl.BlockSpec((F_out, F_in), lambda: (0, 0)),
            pl.BlockSpec((1, F_out), lambda: (0, 0)),
        ],
        out_specs=pl.BlockSpec((N, F_out), lambda: (0, 0)),
        cost_estimate=pl.CostEstimate(
            flops=flops,
            transcendentals=0,
            bytes_accessed=bytes_accessed,
        ),
    )(x, w, b2d)


if __name__ == "__main__":
    key = jax.random.PRNGKey(0)
    kx, kw, kb = jax.random.split(key, 3)

    # Input: x1 = torch.randn(100, 3)
    x = jax.random.normal(kx, (100, 3), dtype=jnp.float32)

    # nn.Linear(3, 3) parameters (uniform init with bound 1/sqrt(fan_in),
    # like PyTorch's default).
    bound = 1.0 / jnp.sqrt(3.0)
    w = jax.random.uniform(kw, (3, 3), minval=-bound, maxval=bound,
                           dtype=jnp.float32)
    b = jax.random.uniform(kb, (3,), minval=-bound, maxval=bound,
                           dtype=jnp.float32)

    out = linear_residual(x, w, b)
    jax.block_until_ready(out)

    # Reference check against plain JAX (PyTorch semantics: x @ W^T + b + x).
    ref = x @ w.T + b + x
    assert out.shape == (100, 3)
    assert jnp.allclose(out, ref, atol=1e-5, rtol=1e-5)

    print("KERNEL_OK")
</pallas_src>

<mosaic_0001>
module attributes {stable_mosaic.version = 11 : i64} {
  func.func @linear_residual_kernel(%arg0: memref<100x3xf32, #tpu.memory_space<vmem>>, %arg1: memref<3x3xf32, #tpu.memory_space<vmem>>, %arg2: memref<1x3xf32, #tpu.memory_space<vmem>>, %arg3: memref<100x3xf32, #tpu.memory_space<vmem>>) attributes {dimension_semantics = [], scalar_prefetch = 0 : i64, scratch_operands = 0 : i64, tpu.core_type = #tpu.core_type<tc>} {
    %c0 = arith.constant 0 : index
    %c0_0 = arith.constant 0 : index
    %0 = vector.load %arg0[%c0, %c0_0] : memref<100x3xf32, #tpu.memory_space<vmem>>, vector<100x3xf32>
    %c0_1 = arith.constant 0 : index
    %c0_2 = arith.constant 0 : index
    %1 = vector.load %arg1[%c0_1, %c0_2] : memref<3x3xf32, #tpu.memory_space<vmem>>, vector<3x3xf32>
    %c0_3 = arith.constant 0 : index
    %c0_4 = arith.constant 0 : index
    %2 = vector.load %arg2[%c0_3, %c0_4] : memref<1x3xf32, #tpu.memory_space<vmem>>, vector<1x3xf32>
    %cst = arith.constant dense<0.000000e+00> : vector<100x3xf32>
    %3 = tpu.matmul %0, %1, %cst {dimension_numbers = #tpu.dot_dimension_numbers<[1], [1], [0], [0], [0, 0, 1, 0], [], []>} : vector<100x3xf32>, vector<3x3xf32>, vector<100x3xf32> -> vector<100x3xf32>
    %4 = vector.broadcast %2 : vector<1x3xf32> to vector<100x3xf32>
    %5 = arith.addf %3, %4 : vector<100x3xf32>
    %6 = arith.addf %5, %0 : vector<100x3xf32>
    %c0_5 = arith.constant 0 : index
    %c0_6 = arith.constant 0 : index
    %7 = vector.load %arg3[%c0_5, %c0_6] : memref<100x3xf32, #tpu.memory_space<vmem>>, vector<100x3xf32>
    tpu.vector_store %arg3[%c0_5, %c0_6], %6 {strides = array<i32>} : memref<100x3xf32, #tpu.memory_space<vmem>>, vector<100x3xf32>,
    return
  }
}

</mosaic_0001>

<llo_original>
// kernel: linear_residual.1
$region0: #{linear_residual.1}
  #allocation0 [shape = 'u32[]', space=smem, size = 0x4, offset = 0x4, fixed_abs, tag = 'smem constant byte address 0x4 - core index']
  #allocation1 [shape = 'u32[72,128]{1,0:T(1,128)}', space=vmem, size = 0x9000, scoped, tag = 'internal scratch']
  %s0 = inlined_call_operand.vmem [shape: f32[100,3], index: 0, kind: input, shape index: {}]
  %s1 = inlined_call_operand.vmem [shape: f32[3,3], index: 1, kind: input, shape index: {}]
  %s2 = inlined_call_operand.vmem [shape: f32[1,3], index: 2, kind: input, shape index: {}]
  %s3 = inlined_call_operand.vmem [shape: f32[100,3], index: 3, kind: output, shape index: {}]
  %s4 = sld [smem:[#allocation0]]
  $region22: #{linear_residual.1} parent=0
    _
  %s6 = ssub.s32 1, %s4
  %s7 = scalar_select 0, %s6, %s4
  // Predicated region
  $region2: #{linear_residual.1} parent=0 // pred_check
    _
  $region3: #{linear_residual.1} parent=0 // pred_check_branch
    %9 = sbr.rel (0) target = $region5
  $region4: #{linear_residual.1} parent=0 // pred_region
    _
  $region5: #{linear_residual.1} parent=0 // pred_fallthru
    _
  // Predicated region
  $region6: #{linear_residual.1} parent=0 // pred_check
    _
  $region7: #{linear_residual.1} parent=0 // pred_check_branch
    %11 = sbr.rel (0) target = $region9
  $region8: #{linear_residual.1} parent=0 // pred_region
    _
  $region9: #{linear_residual.1} parent=0 // pred_fallthru
    _
  // Predicated region
  $region10: #{linear_residual.1} parent=0 // pred_check
    _
  $region11: #{linear_residual.1} parent=0 // pred_check_branch
    %13 = sbr.rel (0) target = $region13
  $region12: #{linear_residual.1} parent=0 // pred_region
    _
  $region13: #{linear_residual.1} parent=0 // pred_fallthru
    _
  %v14 = vld [vmem:[%s0] sm:$0xff]
  %v15 = vld [vmem:[%s0 + $0x8] sm:$0xff]
  %v16 = vld [vmem:[%s0 + $0x10] sm:$0xff]
  %v17 = vld [vmem:[%s0 + $0x18] sm:$0xff]
  %v18 = vld [vmem:[%s0 + $0x20] sm:$0xff]
  %v19 = vld [vmem:[%s0 + $0x28] sm:$0xff]
  %v20 = vld [vmem:[%s0 + $0x30] sm:$0xff]
  %v21 = vld [vmem:[%s0 + $0x38] sm:$0xff]
  %v22 = vld [vmem:[%s0 + $0x40] sm:$0xff]
  %v23 = vld [vmem:[%s0 + $0x48] sm:$0xff]
  %v24 = vld [vmem:[%s0 + $0x50] sm:$0xff]
  %v25 = vld [vmem:[%s0 + $0x58] sm:$0xff]
  %v26 = vld [vmem:[%s0 + $0x60] sm:$0xf]
  %v27 = vld [vmem:[%s1] sm:$0x7]
  %v28 = vld [vmem:[%s2] sm:$0x1]
  %v30 = vperm.slane %v28, 0
  %vm32 = vcmask 23552
  %v34 = vsel %vm32, %v14, 0
  %v37 = vsel %vm32, %v15, 0
  %v40 = vsel %vm32, %v16, 0
  %v43 = vsel %vm32, %v17, 0
  %v46 = vsel %vm32, %v18, 0
  %v49 = vsel %vm32, %v19, 0
  %v52 = vsel %vm32, %v20, 0
  %v55 = vsel %vm32, %v21, 0
  %v58 = vsel %vm32, %v22, 0
  %v61 = vsel %vm32, %v23, 0
  %v64 = vsel %vm32, %v24, 0
  %v67 = vsel %vm32, %v25, 0
  %v70 = vsel %vm32, %v26, 0
  %v73 = vsel %vm32, %v27, 0
  %75 = vmatpush.xpose.msra.mxu0 0.0
  %76 = vmatpush.xpose.msra.mxu0 0.0
  %77 = vmatpush.xpose.msra.mxu0 0.0
  %78 = vmatpush.xpose.msra.mxu0 0.0
  %79 = vmatpush.xpose.msra.mxu0 0.0
  %80 = vmatpush.xpose.msra.mxu0 0.0
  %81 = vmatpush.xpose.msra.mxu0 0.0
  %82 = vmatpush.xpose.msra.mxu0 0.0
  %83 = vmatpush.xpose.msra.mxu0 0.0
  %84 = vmatpush.xpose.msra.mxu0 0.0
  %85 = vmatpush.xpose.msra.mxu0 0.0
  %86 = vmatpush.xpose.msra.mxu0 0.0
  %87 = vmatpush.xpose.msra.mxu0 0.0
  %88 = vmatpush.xpose.msra.mxu0 0.0
  %89 = vmatpush.xpose.msra.mxu0 0.0
  %90 = vmatpush.xpose.msra.mxu0 %v73
  %91 = vmatmul.f32.gmra.mxu0 %v34
  %v92 = vpop.f32.mrf.mxu0
  %v93 = vadd.f32 %v30, %v92
  %94 = vmatmul.f32.gmra.mxu0 %v37
  %v95 = vpop.f32.mrf.mxu0
  %v96 = vadd.f32 %v30, %v95
  %97 = vmatmul.f32.gmra.mxu0 %v40
  %v98 = vpop.f32.mrf.mxu0
  %v99 = vadd.f32 %v30, %v98
  %100 = vmatmul.f32.gmra.mxu0 %v43
  %v101 = vpop.f32.mrf.mxu0
  %v102 = vadd.f32 %v30, %v101
  %103 = vmatmul.f32.gmra.mxu0 %v46
  %v104 = vpop.f32.mrf.mxu0
  %v105 = vadd.f32 %v30, %v104
  %106 = vmatmul.f32.gmra.mxu0 %v49
  %v107 = vpop.f32.mrf.mxu0
  %v108 = vadd.f32 %v30, %v107
  %109 = vmatmul.f32.gmra.mxu0 %v52
  %v110 = vpop.f32.mrf.mxu0
  %v111 = vadd.f32 %v30, %v110
  %112 = vmatmul.f32.gmra.mxu0 %v55
  %v113 = vpop.f32.mrf.mxu0
  %v114 = vadd.f32 %v30, %v113
  %115 = vmatmul.f32.gmra.mxu0 %v58
  %v116 = vpop.f32.mrf.mxu0
  %v117 = vadd.f32 %v30, %v116
  %118 = vmatmul.f32.gmra.mxu0 %v61
  %v119 = vpop.f32.mrf.mxu0
  %v120 = vadd.f32 %v30, %v119
  %121 = vmatmul.f32.gmra.mxu0 %v64
  %v122 = vpop.f32.mrf.mxu0
  %v123 = vadd.f32 %v30, %v122
  %124 = vmatmul.f32.gmra.mxu0 %v67
  %v125 = vpop.f32.mrf.mxu0
  %v126 = vadd.f32 %v30, %v125
  %127 = vmatmul.f32.gmra.mxu0 %v70
  %v128 = vpop.f32.mrf.mxu0
  %v129 = vadd.f32 %v30, %v128
  %130 = vdwg.mxu0
  %v131 = vadd.f32 %v93, %v14
  %v132 = vadd.f32 %v96, %v15
  %v133 = vadd.f32 %v99, %v16
  %v134 = vadd.f32 %v102, %v17
  %v135 = vadd.f32 %v105, %v18
  %v136 = vadd.f32 %v108, %v19
  %v137 = vadd.f32 %v111, %v20
  %v138 = vadd.f32 %v114, %v21
  %v139 = vadd.f32 %v117, %v22
  %v140 = vadd.f32 %v120, %v23
  %v141 = vadd.f32 %v123, %v24
  %v142 = vadd.f32 %v126, %v25
  %v143 = vadd.f32 %v129, %v26
  %144 = vst.msk [vmem:[%s3] sm:$0xff] %vm32, %v131
  %145 = vst.msk [vmem:[%s3 + $0x8] sm:$0xff] %vm32, %v132
  %146 = vst.msk [vmem:[%s3 + $0x10] sm:$0xff] %vm32, %v133
  %147 = vst.msk [vmem:[%s3 + $0x18] sm:$0xff] %vm32, %v134
  %148 = vst.msk [vmem:[%s3 + $0x20] sm:$0xff] %vm32, %v135
  %149 = vst.msk [vmem:[%s3 + $0x28] sm:$0xff] %vm32, %v136
  %150 = vst.msk [vmem:[%s3 + $0x30] sm:$0xff] %vm32, %v137
  %151 = vst.msk [vmem:[%s3 + $0x38] sm:$0xff] %vm32, %v138
  %152 = vst.msk [vmem:[%s3 + $0x40] sm:$0xff] %vm32, %v139
  %153 = vst.msk [vmem:[%s3 + $0x48] sm:$0xff] %vm32, %v140
  %154 = vst.msk [vmem:[%s3 + $0x50] sm:$0xff] %vm32, %v141
  %155 = vst.msk [vmem:[%s3 + $0x58] sm:$0xff] %vm32, %v142
  %vm156 = vcmask 19456
  %157 = vst.msk [vmem:[%s3 + $0x60] sm:$0xf] %vm156, %v143
  // Predicated region
  $region14: #{linear_residual.1} parent=0 // pred_check
    _
  $region15: #{linear_residual.1} parent=0 // pred_check_branch
    %159 = sbr.rel (0) target = $region17
  $region16: #{linear_residual.1} parent=0 // pred_region
    _
  $region17: #{linear_residual.1} parent=0 // pred_fallthru
    _
  // Predicated region
  $region18: #{linear_residual.1} parent=0 // pred_check
    _
  $region19: #{linear_residual.1} parent=0 // pred_check_branch
    %161 = sbr.rel (0) target = $region21
  $region20: #{linear_residual.1} parent=0 // pred_region
    _
  $region21: #{linear_residual.1} parent=0 // pred_fallthru
    _

</llo_original>
